<compile_context>
chip_gen: v6e
topology: v6e:2x2x1
jax: 0.10.0
libtpu: 0.0.40
codegen_flags: <defaults>
</compile_context>

<pallas_src>
import functools

import jax
import jax.numpy as jnp
from jax.experimental import pallas as pl
from jax.experimental.pallas import tpu as pltpu

INPUT_SIZE = 406          # logical input features (matches the PyTorch module)
HIDDEN_SIZE = 128
OUT_SIZE = 2              # logical output features
OUT_PAD = 8               # small zero-pad; wrapper slices back to 2
MAX_BATCH_TILE = 1024     # rows per grid step cap (VMEM footprint ~3-4 MiB)


def kalman_mlp_kernel(x_ref, w1_ref, b1_ref, w2_ref, b2_ref, w3_ref, b3_ref,
                      o_ref):
    w1 = w1_ref[...]
    cdt = w1.dtype  # MXU compute dtype (bf16 by default; f32 also works)
    # Layer 1: relu(x @ W1 + b1)   x: [tb, 406], W1: [406, 128] (K=406 unpadded)
    h = jnp.dot(x_ref[...].astype(cdt), w1, preferred_element_type=jnp.float32)
    h = jnp.maximum(h + b1_ref[...], 0.0)
    # Layer 2: relu(h @ W2 + b2)
    h = jnp.dot(h.astype(cdt), w2_ref[...], preferred_element_type=jnp.float32)
    h = jnp.maximum(h + b2_ref[...], 0.0)
    # Layer 3: relu(h @ W3 + b3)   (W3/b3 zero-padded 2 -> 8 lanes; relu(0)=0)
    o = jnp.dot(h.astype(cdt), w3_ref[...], preferred_element_type=jnp.float32)
    o = jnp.maximum(o + b3_ref[...], 0.0)
    o_ref[...] = o.astype(o_ref.dtype)


def _choose_batch_tile(B):
    """Tile the batch so padding stays < 8 rows and v7x gets >= 2 grid steps."""
    n_steps = pl.cdiv(B, MAX_BATCH_TILE)
    if B >= 256:                       # give both TensorCores work on v7x
        n_steps = max(n_steps, 2)
    tb = -(-B // n_steps)              # ceil(B / n_steps)
    return max(8, ((tb + 7) // 8) * 8)


@functools.partial(jax.jit, static_argnames=("batch_tile", "vmem_limit_bytes"))
def kalman_net_forward(x, prepared_params, *, batch_tile=None,
                       vmem_limit_bytes=None):
    """x: [B, 406] float32 -> [B, 2] float32 (bf16 MXU, f32 accumulation)."""
    w1, b1, w2, b2, w3, b3 = prepared_params
    B = x.shape[0]

    tb = batch_tile if batch_tile is not None else _choose_batch_tile(B)
    tb = max(8, (tb // 8) * 8)
    Bp = pl.cdiv(B, tb) * tb
    if Bp != B:
        x = jnp.pad(x, ((0, Bp - B), (0, 0)))   # batch pad only (< tb rows)

    batch_map = lambda i: (i, 0)
    full_map = lambda i: (0, 0)

    out_padded = pl.pallas_call(
        kalman_mlp_kernel,
        out_shape=jax.ShapeDtypeStruct((Bp, OUT_PAD), jnp.float32),
        grid_spec=pltpu.PrefetchScalarGridSpec(
            num_scalar_prefetch=0,
            grid=(Bp // tb,),
            in_specs=[
                pl.BlockSpec((tb, INPUT_SIZE), batch_map),            # x tile
                pl.BlockSpec((INPUT_SIZE, HIDDEN_SIZE), full_map),    # W1
                pl.BlockSpec((1, HIDDEN_SIZE), full_map),             # b1
                pl.BlockSpec((HIDDEN_SIZE, HIDDEN_SIZE), full_map),   # W2
                pl.BlockSpec((1, HIDDEN_SIZE), full_map),             # b2
                pl.BlockSpec((HIDDEN_SIZE, OUT_PAD), full_map),       # W3 (pad)
                pl.BlockSpec((1, OUT_PAD), full_map),                 # b3 (pad)
            ],
            out_specs=pl.BlockSpec((tb, OUT_PAD), batch_map),
        ),
        compiler_params=pltpu.CompilerParams(
            dimension_semantics=("parallel",),
            vmem_limit_bytes=vmem_limit_bytes,
        ),
    )(x, w1, b1, w2, b2, w3, b3)

    # Drop batch padding and the zero output lanes.
    return out_padded[:B, :OUT_SIZE]


def init_params(key):
    """Deterministic init matching the PyTorch layer shapes.

    nn.Linear(in, out) stores weight [out, in]; we keep the transpose [in, out]
    so the kernel computes x @ W directly.
    """
    k1, k2, k3, k4, k5, k6 = jax.random.split(key, 6)

    def uniform_like_torch(k, shape, fan_in):
        bound = 1.0 / jnp.sqrt(float(fan_in))
        return jax.random.uniform(k, shape, jnp.float32, -bound, bound)

    w1 = uniform_like_torch(k1, (INPUT_SIZE, HIDDEN_SIZE), INPUT_SIZE)
    b1 = uniform_like_torch(k2, (1, HIDDEN_SIZE), INPUT_SIZE)
    w2 = uniform_like_torch(k3, (HIDDEN_SIZE, HIDDEN_SIZE), HIDDEN_SIZE)
    b2 = uniform_like_torch(k4, (1, HIDDEN_SIZE), HIDDEN_SIZE)
    w3 = uniform_like_torch(k5, (HIDDEN_SIZE, OUT_SIZE), HIDDEN_SIZE)
    b3 = uniform_like_torch(k6, (1, OUT_SIZE), HIDDEN_SIZE)
    return (w1, b1, w2, b2, w3, b3)


def prepare_params(params, compute_dtype=jnp.bfloat16):
    """One-time prep (NOT per forward call): cast weights to the MXU compute
    dtype and zero-pad the output layer 2 -> OUT_PAD lanes (relu(0)=0, so the
    extra lanes stay exactly zero). Biases stay f32 (added post-accumulation)."""
    w1, b1, w2, b2, w3, b3 = params
    w3p = jnp.pad(w3, ((0, 0), (0, OUT_PAD - OUT_SIZE)))
    b3p = jnp.pad(b3, ((0, 0), (0, OUT_PAD - OUT_SIZE)))
    return (w1.astype(compute_dtype), b1.astype(jnp.float32),
            w2.astype(compute_dtype), b2.astype(jnp.float32),
            w3p.astype(compute_dtype), b3p.astype(jnp.float32))


def reference_forward(x, params):
    w1, b1, w2, b2, w3, b3 = params
    h = jnp.maximum(x @ w1 + b1, 0.0)
    h = jnp.maximum(h @ w2 + b2, 0.0)
    return jnp.maximum(h @ w3 + b3, 0.0)


if __name__ == "__main__":
    key = jax.random.PRNGKey(0)
    kx, kp = jax.random.split(key)

    params = init_params(kp)
    prepared = prepare_params(params)          # one-time, outside the hot path

    # Small inference-style batch (latency path; grid=(1,)).
    batch = 8
    x = jax.random.normal(kx, (batch, INPUT_SIZE), jnp.float32)
    out = jax.block_until_ready(kalman_net_forward(x, prepared))
    ref = reference_forward(x, params)
    assert out.shape == (batch, OUT_SIZE)
    # bf16 MXU inputs -> not bit-identical to the f32 reference.
    assert jnp.allclose(out, ref, atol=5e-2, rtol=5e-2)

    # Larger batch: exercises multi-step grid (adaptive tile 688) + batch pad.
    batch_big = 2056
    x_big = jax.random.normal(kx, (batch_big, INPUT_SIZE), jnp.float32)
    out_big = jax.block_until_ready(kalman_net_forward(x_big, prepared))
    ref_big = reference_forward(x_big, params)
    assert out_big.shape == (batch_big, OUT_SIZE)
    assert jnp.allclose(out_big, ref_big, atol=5e-2, rtol=5e-2)

    print("KERNEL_OK")
</pallas_src>

<mosaic_0001>
module attributes {stable_mosaic.version = 11 : i64} {
  func.func @kalman_mlp_kernel(%arg0: i32, %arg1: memref<8x406xf32, #tpu.memory_space<vmem>>, %arg2: memref<406x128xbf16, #tpu.memory_space<vmem>>, %arg3: memref<1x128xf32, #tpu.memory_space<vmem>>, %arg4: memref<128x128xbf16, #tpu.memory_space<vmem>>, %arg5: memref<1x128xf32, #tpu.memory_space<vmem>>, %arg6: memref<128x8xbf16, #tpu.memory_space<vmem>>, %arg7: memref<1x8xf32, #tpu.memory_space<vmem>>, %arg8: memref<8x8xf32, #tpu.memory_space<vmem>>) attributes {dimension_semantics = [#tpu.dimension_semantics<parallel>], iteration_bounds = array<i64: 1>, scalar_prefetch = 0 : i64, scratch_operands = 0 : i64, tpu.core_type = #tpu.core_type<tc>, window_params = [{transform_indices = @transform_0, window_bounds = array<i64: 8, 406>}, {pipeline_mode = #tpu.pipeline_mode<synchronous>, transform_indices = @transform_1, window_bounds = array<i64: 406, 128>}, {pipeline_mode = #tpu.pipeline_mode<synchronous>, transform_indices = @transform_2, window_bounds = array<i64: 1, 128>}, {pipeline_mode = #tpu.pipeline_mode<synchronous>, transform_indices = @transform_3, window_bounds = array<i64: 128, 128>}, {pipeline_mode = #tpu.pipeline_mode<synchronous>, transform_indices = @transform_4, window_bounds = array<i64: 1, 128>}, {pipeline_mode = #tpu.pipeline_mode<synchronous>, transform_indices = @transform_5, window_bounds = array<i64: 128, 8>}, {pipeline_mode = #tpu.pipeline_mode<synchronous>, transform_indices = @transform_6, window_bounds = array<i64: 1, 8>}, {transform_indices = @transform_7, window_bounds = array<i64: 8, 8>}]} {
    %c0 = arith.constant 0 : index
    %c0_0 = arith.constant 0 : index
    %0 = vector.load %arg2[%c0, %c0_0] : memref<406x128xbf16, #tpu.memory_space<vmem>>, vector<406x128xbf16>
    %c0_1 = arith.constant 0 : index
    %c0_2 = arith.constant 0 : index
    %1 = vector.load %arg1[%c0_1, %c0_2] : memref<8x406xf32, #tpu.memory_space<vmem>>, vector<8x406xf32>
    %2 = arith.truncf %1 : vector<8x406xf32> to vector<8x406xbf16>
    %cst = arith.constant dense<0.000000e+00> : vector<8x128xf32>
    %3 = tpu.matmul %2, %0, %cst {dimension_numbers = #tpu.dot_dimension_numbers<[1], [0], [0], [1], [0, 0, 1, 1], [], []>} : vector<8x406xbf16>, vector<406x128xbf16>, vector<8x128xf32> -> vector<8x128xf32>
    %c0_3 = arith.constant 0 : index
    %c0_4 = arith.constant 0 : index
    %4 = vector.load %arg3[%c0_3, %c0_4] : memref<1x128xf32, #tpu.memory_space<vmem>>, vector<1x128xf32>
    %5 = vector.broadcast %4 : vector<1x128xf32> to vector<8x128xf32>
    %6 = arith.addf %3, %5 : vector<8x128xf32>
    %cst_5 = arith.constant 0.000000e+00 : f32
    %7 = vector.broadcast %cst_5 : f32 to vector<8x128xf32>
    %8 = arith.maximumf %6, %7 : vector<8x128xf32>
    %9 = arith.truncf %8 : vector<8x128xf32> to vector<8x128xbf16>
    %c0_6 = arith.constant 0 : index
    %c0_7 = arith.constant 0 : index
    %10 = vector.load %arg4[%c0_6, %c0_7] : memref<128x128xbf16, #tpu.memory_space<vmem>>, vector<128x128xbf16>
    %cst_8 = arith.constant dense<0.000000e+00> : vector<8x128xf32>
    %11 = tpu.matmul %9, %10, %cst_8 {dimension_numbers = #tpu.dot_dimension_numbers<[1], [0], [0], [1], [0, 0, 1, 1], [], []>} : vector<8x128xbf16>, vector<128x128xbf16>, vector<8x128xf32> -> vector<8x128xf32>
    %c0_9 = arith.constant 0 : index
    %c0_10 = arith.constant 0 : index
    %12 = vector.load %arg5[%c0_9, %c0_10] : memref<1x128xf32, #tpu.memory_space<vmem>>, vector<1x128xf32>
    %13 = vector.broadcast %12 : vector<1x128xf32> to vector<8x128xf32>
    %14 = arith.addf %11, %13 : vector<8x128xf32>
    %cst_11 = arith.constant 0.000000e+00 : f32
    %15 = vector.broadcast %cst_11 : f32 to vector<8x128xf32>
    %16 = arith.maximumf %14, %15 : vector<8x128xf32>
    %17 = arith.truncf %16 : vector<8x128xf32> to vector<8x128xbf16>
    %c0_12 = arith.constant 0 : index
    %c0_13 = arith.constant 0 : index
    %18 = vector.load %arg6[%c0_12, %c0_13] : memref<128x8xbf16, #tpu.memory_space<vmem>>, vector<128x8xbf16>
    %cst_14 = arith.constant dense<0.000000e+00> : vector<8x8xf32>
    %19 = tpu.matmul %17, %18, %cst_14 {dimension_numbers = #tpu.dot_dimension_numbers<[1], [0], [0], [1], [0, 0, 1, 1], [], []>} : vector<8x128xbf16>, vector<128x8xbf16>, vector<8x8xf32> -> vector<8x8xf32>
    %c0_15 = arith.constant 0 : index
    %c0_16 = arith.constant 0 : index
    %20 = vector.load %arg7[%c0_15, %c0_16] : memref<1x8xf32, #tpu.memory_space<vmem>>, vector<1x8xf32>
    %21 = vector.broadcast %20 : vector<1x8xf32> to vector<8x8xf32>
    %22 = arith.addf %19, %21 : vector<8x8xf32>
    %cst_17 = arith.constant 0.000000e+00 : f32
    %23 = vector.broadcast %cst_17 : f32 to vector<8x8xf32>
    %24 = arith.maximumf %22, %23 : vector<8x8xf32>
    %c0_18 = arith.constant 0 : index
    %c0_19 = arith.constant 0 : index
    %25 = vector.load %arg8[%c0_18, %c0_19] : memref<8x8xf32, #tpu.memory_space<vmem>>, vector<8x8xf32>
    tpu.vector_store %arg8[%c0_18, %c0_19], %24 {strides = array<i32>} : memref<8x8xf32, #tpu.memory_space<vmem>>, vector<8x8xf32>,
    return
  }
  func.func @transform_0(%arg0: i32) -> (i32, i32) {
    %c0_i32 = arith.constant 0 : i32
    %c0_i32_0 = arith.constant 0 : i32
    return %arg0, %c0_i32 : i32, i32
  }
  func.func @transform_1(%arg0: i32) -> (i32, i32) {
    %c0_i32 = arith.constant 0 : i32
    %c0_i32_0 = arith.constant 0 : i32
    %c0_i32_1 = arith.constant 0 : i32
    return %c0_i32, %c0_i32_0 : i32, i32
  }
  func.func @transform_2(%arg0: i32) -> (i32, i32) {
    %c0_i32 = arith.constant 0 : i32
    %c0_i32_0 = arith.constant 0 : i32
    %c0_i32_1 = arith.constant 0 : i32
    return %c0_i32, %c0_i32_0 : i32, i32
  }
  func.func @transform_3(%arg0: i32) -> (i32, i32) {
    %c0_i32 = arith.constant 0 : i32
    %c0_i32_0 = arith.constant 0 : i32
    %c0_i32_1 = arith.constant 0 : i32
    return %c0_i32, %c0_i32_0 : i32, i32
  }
  func.func @transform_4(%arg0: i32) -> (i32, i32) {
    %c0_i32 = arith.constant 0 : i32
    %c0_i32_0 = arith.constant 0 : i32
    %c0_i32_1 = arith.constant 0 : i32
    return %c0_i32, %c0_i32_0 : i32, i32
  }
  func.func @transform_5(%arg0: i32) -> (i32, i32) {
    %c0_i32 = arith.constant 0 : i32
    %c0_i32_0 = arith.constant 0 : i32
    %c0_i32_1 = arith.constant 0 : i32
    return %c0_i32, %c0_i32_0 : i32, i32
  }
  func.func @transform_6(%arg0: i32) -> (i32, i32) {
    %c0_i32 = arith.constant 0 : i32
    %c0_i32_0 = arith.constant 0 : i32
    %c0_i32_1 = arith.constant 0 : i32
    return %c0_i32, %c0_i32_0 : i32, i32
  }
  func.func @transform_7(%arg0: i32) -> (i32, i32) {
    %c0_i32 = arith.constant 0 : i32
    %c0_i32_0 = arith.constant 0 : i32
    return %arg0, %c0_i32 : i32, i32
  }
}

</mosaic_0001>

<llo_original>
// kernel: kalman_net_forward.1
$region0: #{kalman_net_forward.1}
  #allocation0 [shape = 'u32[]', space=smem, size = 0x4, offset = 0x4, fixed_abs, tag = 'smem constant byte address 0x4 - core index']
  #allocation1 [shape = 'u32[144,128]{1,0:T(1,128)}', space=vmem, size = 0x12000, scoped, tag = 'internal scratch']
  %s0 = inlined_call_operand.hbm [shape: f32[8,406], index: 0, kind: input, shape index: {}]
  %s1 = inlined_call_operand.hbm [shape: bf16[406,128], index: 1, kind: input, shape index: {}]
  %s2 = inlined_call_operand.vmem [shape: f32[1,128], index: 2, kind: input, shape index: {}]
  %s3 = inlined_call_operand.vmem [shape: bf16[128,128], index: 3, kind: input, shape index: {}]
  %s4 = inlined_call_operand.vmem [shape: f32[1,128], index: 4, kind: input, shape index: {}]
  %s5 = inlined_call_operand.vmem [shape: bf16[128,8], index: 5, kind: input, shape index: {}]
  %s6 = inlined_call_operand.vmem [shape: f32[1,8], index: 6, kind: input, shape index: {}]
  %s7 = inlined_call_operand.vmem [shape: f32[8,8], index: 7, kind: output, shape index: {}]
  %s8 = sld [smem:[#allocation0]]
  $region46: #{kalman_net_forward.1} parent=0
    _
  %s10 = ssub.s32 1, %s8
  %s11 = scalar_select 0, %s10, %s8
  $region1: #{kalman_net_forward.1} parent=0
    #allocation2 [shape = 'u8[16384]{0}', space=vmem, size = 0x4000, scoped, tag = 'input window, operand 0, single buffered']
    #allocation3 [shape = 's32[1]{0}', space=sflag, size = 0x4, scoped, tag = 'scoped memory for kalman_net_forward.1']
    #allocation4 [shape = 'u8[104448]{0}', space=vmem, size = 0x19800, scoped, tag = 'input window, operand 1, single buffered']
    #allocation5 [shape = 's32[1]{0}', space=sflag, size = 0x4, scoped, tag = 'scoped memory for kalman_net_forward.1']
    %12 = vsyncpa [#allocation3], 0
    %13 = vsyncpa [#allocation5], 0
    // Predicated region
    $region2: #{kalman_net_forward.1} parent=1 // pred_check
      _
    $region3: #{kalman_net_forward.1} parent=1 // pred_check_branch
      %15 = sbr.rel (0) target = $region5
    $region4: #{kalman_net_forward.1} parent=1 // pred_region
      %s17 = ssub.s32 512, 512
      %18 = vsyncadd [#allocation3], %s17
      %s20 = sshll.u32 [#allocation2], 4
      %s21 = int_to_ptr.vmem [resolvable:$true] %s20
      %23 = dma.hbm_to_vmem [thread:$0]  %s0, 512, %s21, [#allocation3]
    $region5: #{kalman_net_forward.1} parent=1 // pred_fallthru
      _
    // Predicated region
    $region6: #{kalman_net_forward.1} parent=1 // pred_check
      _
    $region7: #{kalman_net_forward.1} parent=1 // pred_check_branch
      %25 = sbr.rel (0) target = $region9
    $region8: #{kalman_net_forward.1} parent=1 // pred_region
      %s27 = ssub.s32 3264, 3264
      %28 = vsyncadd [#allocation5], %s27
      %s29 = sshll.u32 [#allocation4], 4
      %s30 = int_to_ptr.vmem [resolvable:$true] %s29
      %35 = dma.hbm_to_vmem [thread:$0]  %s1, 3264, %s30, [#allocation5], 64, 64, 4
    $region9: #{kalman_net_forward.1} parent=1 // pred_fallthru
      _
    // Predicated region
    $region10: #{kalman_net_forward.1} parent=1 // pred_check
      _
    $region11: #{kalman_net_forward.1} parent=1 // pred_check_branch
      %37 = sbr.rel (0) target = $region13
    $region12: #{kalman_net_forward.1} parent=1 // pred_region
      _
    $region13: #{kalman_net_forward.1} parent=1 // pred_fallthru
      _
    // Predicated region
    $region14: #{kalman_net_forward.1} parent=1 // pred_check
      _
    $region15: #{kalman_net_forward.1} parent=1 // pred_check_branch
      %39 = sbr.rel (0) target = $region17
    $region16: #{kalman_net_forward.1} parent=1 // pred_region
      _
    $region17: #{kalman_net_forward.1} parent=1 // pred_fallthru
      _
    // Predicated region
    $region18: #{kalman_net_forward.1} parent=1 // pred_check
      _
    $region19: #{kalman_net_forward.1} parent=1 // pred_check_branch
      %41 = sbr.rel (0) target = $region21
    $region20: #{kalman_net_forward.1} parent=1 // pred_region
      _
    $region21: #{kalman_net_forward.1} parent=1 // pred_fallthru
      _
    // Predicated region
    $region22: #{kalman_net_forward.1} parent=1 // pred_check
      _
    $region23: #{kalman_net_forward.1} parent=1 // pred_check_branch
      %43 = sbr.rel (0) target = $region25
    $region24: #{kalman_net_forward.1} parent=1 // pred_region
      _
    $region25: #{kalman_net_forward.1} parent=1 // pred_fallthru
      _
    // Predicated region
    $region26: #{kalman_net_forward.1} parent=1 // pred_check
      _
    $region27: #{kalman_net_forward.1} parent=1 // pred_check_branch
      %45 = sbr.rel (0) target = $region29
    $region28: #{kalman_net_forward.1} parent=1 // pred_region
      _
    $region29: #{kalman_net_forward.1} parent=1 // pred_fallthru
      _
    // Predicated region
    $region30: #{kalman_net_forward.1} parent=1 // pred_check
      _
    $region31: #{kalman_net_forward.1} parent=1 // pred_check_branch
      %47 = sbr.rel (0) target = $region33
    $region32: #{kalman_net_forward.1} parent=1 // pred_region
      %48 = dma.done [#allocation3], 512
    $region33: #{kalman_net_forward.1} parent=1 // pred_fallthru
      _
    // Predicated region
    $region34: #{kalman_net_forward.1} parent=1 // pred_check
      _
    $region35: #{kalman_net_forward.1} parent=1 // pred_check_branch
      %50 = sbr.rel (0) target = $region37
    $region36: #{kalman_net_forward.1} parent=1 // pred_region
      %51 = dma.done [#allocation5], 3264
    $region37: #{kalman_net_forward.1} parent=1 // pred_fallthru
      _
    %v53 = vld [vmem:[#allocation4] sm:$0xf]
    %v54 = vld [vmem:[#allocation4 + $0x4] sm:$0xf]
    %v55 = vld [vmem:[#allocation4 + $0x8] sm:$0xf]
    %v56 = vld [vmem:[#allocation4 + $0xc] sm:$0xf]
    %v57 = vld [vmem:[#allocation4 + $0x10] sm:$0xf]
    %v58 = vld [vmem:[#allocation4 + $0x14] sm:$0xf]
    %v59 = vld [vmem:[#allocation4 + $0x18] sm:$0xf]
    %v60 = vld [vmem:[#allocation4 + $0x1c] sm:$0xf]
    %v61 = vld [vmem:[#allocation4 + $0x20] sm:$0xf]
    %v62 = vld [vmem:[#allocation4 + $0x24] sm:$0xf]
    %v63 = vld [vmem:[#allocation4 + $0x28] sm:$0xf]
    %v64 = vld [vmem:[#allocation4 + $0x2c] sm:$0xf]
    %v65 = vld [vmem:[#allocation4 + $0x30] sm:$0xf]
    %v66 = vld [vmem:[#allocation4 + $0x34] sm:$0xf]
    %v67 = vld [vmem:[#allocation4 + $0x38] sm:$0xf]
    %v68 = vld [vmem:[#allocation4 + $0x3c] sm:$0xf]
    %v69 = vld [vmem:[#allocation4 + $0x40] sm:$0xf]
    %v70 = vld [vmem:[#allocation4 + $0x44] sm:$0xf]
    %v71 = vld [vmem:[#allocation4 + $0x48] sm:$0xf]
    %v72 = vld [vmem:[#allocation4 + $0x4c] sm:$0xf]
    %v73 = vld [vmem:[#allocation4 + $0x50] sm:$0xf]
    %v74 = vld [vmem:[#allocation4 + $0x54] sm:$0xf]
    %v75 = vld [vmem:[#allocation4 + $0x58] sm:$0xf]
    %v76 = vld [vmem:[#allocation4 + $0x5c] sm:$0xf]
    %v77 = vld [vmem:[#allocation4 + $0x60] sm:$0xf]
    %v78 = vld [vmem:[#allocation4 + $0x64] sm:$0xf]
    %v79 = vld [vmem:[#allocation4 + $0x68] sm:$0xf]
    %v80 = vld [vmem:[#allocation4 + $0x6c] sm:$0xf]
    %v81 = vld [vmem:[#allocation4 + $0x70] sm:$0xf]
    %v82 = vld [vmem:[#allocation4 + $0x74] sm:$0xf]
    %v83 = vld [vmem:[#allocation4 + $0x78] sm:$0xf]
    %v84 = vld [vmem:[#allocation4 + $0x7c] sm:$0xf]
    %v85 = vld [vmem:[#allocation4 + $0x80] sm:$0xf]
    %v86 = vld [vmem:[#allocation4 + $0x84] sm:$0xf]
    %v87 = vld [vmem:[#allocation4 + $0x88] sm:$0xf]
    %v88 = vld [vmem:[#allocation4 + $0x8c] sm:$0xf]
    %v89 = vld [vmem:[#allocation4 + $0x90] sm:$0xf]
    %v90 = vld [vmem:[#allocation4 + $0x94] sm:$0xf]
    %v91 = vld [vmem:[#allocation4 + $0x98] sm:$0xf]
    %v92 = vld [vmem:[#allocation4 + $0x9c] sm:$0xf]
    %v93 = vld [vmem:[#allocation4 + $0xa0] sm:$0xf]
    %v94 = vld [vmem:[#allocation4 + $0xa4] sm:$0xf]
    %v95 = vld [vmem:[#allocation4 + $0xa8] sm:$0xf]
    %v96 = vld [vmem:[#allocation4 + $0xac] sm:$0xf]
    %v97 = vld [vmem:[#allocation4 + $0xb0] sm:$0xf]
    %v98 = vld [vmem:[#allocation4 + $0xb4] sm:$0xf]
    %v99 = vld [vmem:[#allocation4 + $0xb8] sm:$0xf]
    %v100 = vld [vmem:[#allocation4 + $0xbc] sm:$0xf]
    %v101 = vld [vmem:[#allocation4 + $0xc0] sm:$0xf]
    %v102 = vld [vmem:[#allocation4 + $0xc4] sm:$0xf]
    %v103 = vld [vmem:[#allocation4 + $0xc8] sm:$0x7]
    %v104 = vld [vmem:[#allocation2] sm:$0xff]
    %v105 = vld [vmem:[#allocation2 + $0x8] sm:$0xff]
    %v106 = vld [vmem:[#allocation2 + $0x10] sm:$0xff]
    %v107 = vld [vmem:[#allocation2 + $0x18] sm:$0xff]
    %v108 = vpack.c.bf16 %v104, %v104
    %v109 = vpack.c.bf16 %v105, %v105
    %v110 = vpack.c.bf16 %v106, %v106
    %v111 = vpack.c.bf16 %v107, %v107
    %v112 = vld [vmem:[%s2] sm:$0x1]
    %v114 = vlaneseq
    %v115 = vshrl.u32 %v114, 7
    %v116 = vsub.s32 0, %v115
    %v117 = vrot.slane %v112, %v116
    %v170 = vunpack.c.l.b16 %v53
    %v171 = vunpack.c.l.b16 %v54
    %v172 = vunpack.c.l.b16 %v55
    %v173 = vunpack.c.l.b16 %v56
    %v174 = vunpack.c.l.b16 %v57
    %v175 = vunpack.c.l.b16 %v58
    %v176 = vunpack.c.l.b16 %v59
    %v177 = vunpack.c.l.b16 %v60
    %v178 = vunpack.c.l.b16 %v61
    %v179 = vunpack.c.l.b16 %v62
    %v180 = vunpack.c.l.b16 %v63
    %v181 = vunpack.c.l.b16 %v64
    %v182 = vunpack.c.l.b16 %v65
    %v183 = vunpack.c.l.b16 %v66
    %v184 = vunpack.c.l.b16 %v67
    %v185 = vunpack.c.l.b16 %v68
    %v186 = vunpack.c.l.b16 %v69
    %v187 = vunpack.c.l.b16 %v70
    %v188 = vunpack.c.l.b16 %v71
    %v189 = vunpack.c.l.b16 %v72
    %v190 = vunpack.c.l.b16 %v73
    %v191 = vunpack.c.l.b16 %v74
    %v192 = vunpack.c.l.b16 %v75
    %v193 = vunpack.c.l.b16 %v76
    %v194 = vunpack.c.l.b16 %v77
    %v195 = vunpack.c.l.b16 %v78
    %v196 = vunpack.c.l.b16 %v79
    %v197 = vunpack.c.l.b16 %v80
    %v198 = vunpack.c.l.b16 %v81
    %v199 = vunpack.c.l.b16 %v82
    %v200 = vunpack.c.l.b16 %v83
    %v201 = vunpack.c.l.b16 %v84
    %v202 = vunpack.c.l.b16 %v85
    %v203 = vunpack.c.l.b16 %v86
    %v204 = vunpack.c.l.b16 %v87
    %v205 = vunpack.c.l.b16 %v88
    %v206 = vunpack.c.l.b16 %v89
    %v207 = vunpack.c.l.b16 %v90
    %v208 = vunpack.c.l.b16 %v91
    %v209 = vunpack.c.l.b16 %v92
    %v210 = vunpack.c.l.b16 %v93
    %v211 = vunpack.c.l.b16 %v94
    %v212 = vunpack.c.l.b16 %v95
    %v213 = vunpack.c.l.b16 %v96
    %v214 = vunpack.c.l.b16 %v97
    %v215 = vunpack.c.l.b16 %v98
    %v216 = vunpack.c.l.b16 %v99
    %v217 = vunpack.c.l.b16 %v100
    %v218 = vunpack.c.l.b16 %v101
    %v219 = vunpack.c.l.b16 %v102
    %v220 = vunpack.c.l.b16 %v103
    %v221 = vpack.c.b16 %v171, %v170
    %v222 = vpack.c.b16 %v173, %v172
    %v223 = vpack.c.b16 %v175, %v174
    %v224 = vpack.c.b16 %v177, %v176
    %v225 = vpack.c.b16 %v179, %v178
    %v226 = vpack.c.b16 %v181, %v180
    %v227 = vpack.c.b16 %v183, %v182
    %v228 = vpack.c.b16 %v185, %v184
    %v229 = vpack.c.b16 %v187, %v186
    %v230 = vpack.c.b16 %v189, %v188
    %v231 = vpack.c.b16 %v191, %v190
    %v232 = vpack.c.b16 %v193, %v192
    %v233 = vpack.c.b16 %v195, %v194
    %v234 = vpack.c.b16 %v197, %v196
    %v235 = vpack.c.b16 %v199, %v198
    %v236 = vpack.c.b16 %v201, %v200
    %v237 = vpack.c.b16 %v203, %v202
    %v238 = vpack.c.b16 %v205, %v204
    %v239 = vpack.c.b16 %v207, %v206
    %v240 = vpack.c.b16 %v209, %v208
    %v241 = vpack.c.b16 %v211, %v210
    %v242 = vpack.c.b16 %v213, %v212
    %v243 = vpack.c.b16 %v215, %v214
    %v244 = vpack.c.b16 %v217, %v216
    %v245 = vpack.c.b16 %v219, %v218
    %v246 = vpack.c.b16 %v220, %v220
    %vm272 = vcmask 179200
    %v274 = vsel %vm272, %v111, 0
    %vm276 = vcmask 1042432
    %v278 = vsel %vm276, %v246, 0
    %280 = vmatprep.subr.bf16.mxu0 0
    %281 = vmatpush1.bf16.msra.mxu0 %v228
    %282 = vmatprep.subr.bf16.mxu0 0
    %283 = vmatpush1.bf16.msra.mxu0 %v227
    %284 = vmatprep.subr.bf16.mxu0 0
    %285 = vmatpush1.bf16.msra.mxu0 %v226
    %286 = vmatprep.subr.bf16.mxu0 0
    %287 = vmatpush1.bf16.msra.mxu0 %v225
    %288 = vmatprep.subr.bf16.mxu0 0
    %289 = vmatpush1.bf16.msra.mxu0 %v224
    %290 = vmatprep.subr.bf16.mxu0 0
    %291 = vmatpush1.bf16.msra.mxu0 %v223
    %292 = vmatprep.subr.bf16.mxu0 0
    %293 = vmatpush1.bf16.msra.mxu0 %v222
    %294 = vmatprep.subr.bf16.mxu0 0
    %295 = vmatpush1.bf16.msra.mxu0 %v221
    %296 = vmatprep.subr.bf16.mxu0 0
    %297 = vmatpush2.bf16.msra.mxu0 %v236
    %298 = vmatprep.subr.bf16.mxu0 0
    %299 = vmatpush2.bf16.msra.mxu0 %v235
    %300 = vmatprep.subr.bf16.mxu0 0
    %301 = vmatpush2.bf16.msra.mxu0 %v234
    %302 = vmatprep.subr.bf16.mxu0 0
    %303 = vmatpush2.bf16.msra.mxu0 %v233
    %304 = vmatprep.subr.bf16.mxu0 0
    %305 = vmatpush2.bf16.msra.mxu0 %v232
    %306 = vmatprep.subr.bf16.mxu0 0
    %307 = vmatpush2.bf16.msra.mxu0 %v231
    %308 = vmatprep.subr.bf16.mxu0 0
    %309 = vmatpush2.bf16.msra.mxu0 %v230
    %310 = vmatprep.subr.bf16.mxu0 0
    %311 = vmatpush2.bf16.msra.mxu0 %v229
    %312 = vmatprep.mubr.bf16.mxu0 %v109
    %313 = vmatmul.mubr.bf16.gmra.mxu0 %v108
    %v314 = vpop.f32.mrf.mxu0
    %v315 = vadd.f32 %v117, %v314
    %v316 = vpop.f32.mrf.mxu0
    %v317 = vpop.f32.mrf.mxu0
    %v318 = vpop.f32.mrf.mxu0
    %319 = vdwg.mxu0
    %320 = vmatprep.subr.bf16.mxu0 0
    %321 = vmatpush1.bf16.msra.mxu0 %v244
    %322 = vmatprep.subr.bf16.mxu0 0
    %323 = vmatpush1.bf16.msra.mxu0 %v243
    %324 = vmatprep.subr.bf16.mxu0 0
    %325 = vmatpush1.bf16.msra.mxu0 %v242
    %326 = vmatprep.subr.bf16.mxu0 0
    %327 = vmatpush1.bf16.msra.mxu0 %v241
    %328 = vmatprep.subr.bf16.mxu0 0
    %329 = vmatpush1.bf16.msra.mxu0 %v240
    %330 = vmatprep.subr.bf16.mxu0 0
    %331 = vmatpush1.bf16.msra.mxu0 %v239
    %332 = vmatprep.subr.bf16.mxu0 0
    %333 = vmatpush1.bf16.msra.mxu0 %v238
    %334 = vmatprep.subr.bf16.mxu0 0
    %335 = vmatpush1.bf16.msra.mxu0 %v237
    %336 = vmatprep.subr.bf16.mxu0 0
    %337 = vmatpush2.bf16.msra.mxu0 0
    %338 = vmatprep.subr.bf16.mxu0 0
    %339 = vmatpush2.bf16.msra.mxu0 0
    %340 = vmatprep.subr.bf16.mxu0 0
    %341 = vmatpush2.bf16.msra.mxu0 0
    %342 = vmatprep.subr.bf16.mxu0 0
    %343 = vmatpush2.bf16.msra.mxu0 0
    %344 = vmatprep.subr.bf16.mxu0 0
    %345 = vmatpush2.bf16.msra.mxu0 0
    %346 = vmatprep.subr.bf16.mxu0 0
    %347 = vmatpush2.bf16.msra.mxu0 0
    %348 = vmatprep.subr.bf16.mxu0 0
    %349 = vmatpush2.bf16.msra.mxu0 %v278
    %350 = vmatprep.subr.bf16.mxu0 0
    %351 = vmatpush2.bf16.msra.mxu0 %v245
    %352 = vmatprep.mubr.bf16.mxu0 %v274
    %353 = vmatmul.mubr.bf16.gmra.mxu0 %v110
    %v354 = vpop.f32.mrf.mxu0
    %v355 = vadd.f32 %v315, %v354
    %v356 = vpop.f32.mrf.mxu0
    %v357 = vpop.f32.mrf.mxu0
    %v358 = vpop.f32.mrf.mxu0
    %359 = vdwg.mxu0
    %v360 = vmax.f32 %v355, 0.0
    %v361 = vpack.c.bf16 %v360, %v360
    %v362 = vld [vmem:[%s3] sm:$0xf]
    %v363 = vld [vmem:[%s3 + $0x4] sm:$0xf]
    %v364 = vld [vmem:[%s3 + $0x8] sm:$0xf]
    %v365 = vld [vmem:[%s3 + $0xc] sm:$0xf]
    %v366 = vld [vmem:[%s3 + $0x10] sm:$0xf]
    %v367 = vld [vmem:[%s3 + $0x14] sm:$0xf]
    %v368 = vld [vmem:[%s3 + $0x18] sm:$0xf]
    %v369 = vld [vmem:[%s3 + $0x1c] sm:$0xf]
    %v370 = vld [vmem:[%s3 + $0x20] sm:$0xf]
    %v371 = vld [vmem:[%s3 + $0x24] sm:$0xf]
    %v372 = vld [vmem:[%s3 + $0x28] sm:$0xf]
    %v373 = vld [vmem:[%s3 + $0x2c] sm:$0xf]
    %v374 = vld [vmem:[%s3 + $0x30] sm:$0xf]
    %v375 = vld [vmem:[%s3 + $0x34] sm:$0xf]
    %v376 = vld [vmem:[%s3 + $0x38] sm:$0xf]
    %v377 = vld [vmem:[%s3 + $0x3c] sm:$0xf]
    %v378 = vld [vmem:[%s4] sm:$0x1]
    %v380 = vlaneseq
    %v381 = vshrl.u32 %v380, 7
    %v382 = vsub.s32 0, %v381
    %v383 = vrot.slane %v378, %v382
    %v401 = vunpack.c.l.b16 %v362
    %v402 = vunpack.c.l.b16 %v363
    %v403 = vunpack.c.l.b16 %v364
    %v404 = vunpack.c.l.b16 %v365
    %v405 = vunpack.c.l.b16 %v366
    %v406 = vunpack.c.l.b16 %v367
    %v407 = vunpack.c.l.b16 %v368
    %v408 = vunpack.c.l.b16 %v369
    %v409 = vunpack.c.l.b16 %v370
    %v410 = vunpack.c.l.b16 %v371
    %v411 = vunpack.c.l.b16 %v372
    %v412 = vunpack.c.l.b16 %v373
    %v413 = vunpack.c.l.b16 %v374
    %v414 = vunpack.c.l.b16 %v375
    %v415 = vunpack.c.l.b16 %v376
    %v416 = vunpack.c.l.b16 %v377
    %v417 = vpack.c.b16 %v402, %v401
    %v418 = vpack.c.b16 %v404, %v403
    %v419 = vpack.c.b16 %v406, %v405
    %v420 = vpack.c.b16 %v408, %v407
    %v421 = vpack.c.b16 %v410, %v409
    %v422 = vpack.c.b16 %v412, %v411
    %v423 = vpack.c.b16 %v414, %v413
    %v424 = vpack.c.b16 %v416, %v415
    %433 = vmatprep.subr.bf16.mxu0 0
    %434 = vmatpush1.bf16.msra.mxu0 %v424
    %435 = vmatprep.subr.bf16.mxu0 0
    %436 = vmatpush1.bf16.msra.mxu0 %v423
    %437 = vmatprep.subr.bf16.mxu0 0
    %438 = vmatpush1.bf16.msra.mxu0 %v422
    %439 = vmatprep.subr.bf16.mxu0 0
    %440 = vmatpush1.bf16.msra.mxu0 %v421
    %441 = vmatprep.subr.bf16.mxu0 0
    %442 = vmatpush1.bf16.msra.mxu0 %v420
    %443 = vmatprep.subr.bf16.mxu0 0
    %444 = vmatpush1.bf16.msra.mxu0 %v419
    %445 = vmatprep.subr.bf16.mxu0 0
    %446 = vmatpush1.bf16.msra.mxu0 %v418
    %447 = vmatprep.subr.bf16.mxu0 0
    %448 = vmatpush1.bf16.msra.mxu0 %v417
    %449 = vmatprep.subr.bf16.mxu0 0
    %450 = vmatpush2.bf16.msra.mxu0 0
    %451 = vmatprep.subr.bf16.mxu0 0
    %452 = vmatpush2.bf16.msra.mxu0 0
    %453 = vmatprep.subr.bf16.mxu0 0
    %454 = vmatpush2.bf16.msra.mxu0 0
    %455 = vmatprep.subr.bf16.mxu0 0
    %456 = vmatpush2.bf16.msra.mxu0 0
    %457 = vmatprep.subr.bf16.mxu0 0
    %458 = vmatpush2.bf16.msra.mxu0 0
    %459 = vmatprep.subr.bf16.mxu0 0
    %460 = vmatpush2.bf16.msra.mxu0 0
    %461 = vmatprep.subr.bf16.mxu0 0
    %462 = vmatpush2.bf16.msra.mxu0 0
    %463 = vmatprep.subr.bf16.mxu0 0
    %464 = vmatpush2.bf16.msra.mxu0 0
    %465 = vmatprep.mubr.bf16.mxu0 0
    %466 = vmatmul.mubr.bf16.gmra.mxu0 %v361
    %v467 = vpop.f32.mrf.mxu0
    %v468 = vadd.f32 %v383, %v467
    %v469 = vpop.f32.mrf.mxu0
    %v470 = vpop.f32.mrf.mxu0
    %v471 = vpop.f32.mrf.mxu0
    %472 = vdwg.mxu0
    %v473 = vmax.f32 %v468, 0.0
    %v474 = vpack.c.bf16 %v473, %v473
    %v475 = vld [vmem:[%s5] sm:$0xf]
    %v476 = vld [vmem:[%s5 + $0x4] sm:$0xf]
    %v477 = vld [vmem:[%s5 + $0x8] sm:$0xf]
    %v478 = vld [vmem:[%s5 + $0xc] sm:$0xf]
    %v479 = vld [vmem:[%s5 + $0x10] sm:$0xf]
    %v480 = vld [vmem:[%s5 + $0x14] sm:$0xf]
    %v481 = vld [vmem:[%s5 + $0x18] sm:$0xf]
    %v482 = vld [vmem:[%s5 + $0x1c] sm:$0xf]
    %v483 = vld [vmem:[%s5 + $0x20] sm:$0xf]
    %v484 = vld [vmem:[%s5 + $0x24] sm:$0xf]
    %v485 = vld [vmem:[%s5 + $0x28] sm:$0xf]
    %v486 = vld [vmem:[%s5 + $0x2c] sm:$0xf]
    %v487 = vld [vmem:[%s5 + $0x30] sm:$0xf]
    %v488 = vld [vmem:[%s5 + $0x34] sm:$0xf]
    %v489 = vld [vmem:[%s5 + $0x38] sm:$0xf]
    %v490 = vld [vmem:[%s5 + $0x3c] sm:$0xf]
    %v491 = vld [vmem:[%s6] sm:$0x1]
    %v493 = vlaneseq
    %v494 = vshrl.u32 %v493, 7
    %v495 = vsub.s32 0, %v494
    %v496 = vrot.slane %v491, %v495
    %v514 = vunpack.c.l.b16 %v475
    %v515 = vunpack.c.l.b16 %v476
    %v516 = vunpack.c.l.b16 %v477
    %v517 = vunpack.c.l.b16 %v478
    %v518 = vunpack.c.l.b16 %v479
    %v519 = vunpack.c.l.b16 %v480
    %v520 = vunpack.c.l.b16 %v481
    %v521 = vunpack.c.l.b16 %v482
    %v522 = vunpack.c.l.b16 %v483
    %v523 = vunpack.c.l.b16 %v484
    %v524 = vunpack.c.l.b16 %v485
    %v525 = vunpack.c.l.b16 %v486
    %v526 = vunpack.c.l.b16 %v487
    %v527 = vunpack.c.l.b16 %v488
    %v528 = vunpack.c.l.b16 %v489
    %v529 = vunpack.c.l.b16 %v490
    %v530 = vpack.c.b16 %v515, %v514
    %v531 = vpack.c.b16 %v517, %v516
    %v532 = vpack.c.b16 %v519, %v518
    %v533 = vpack.c.b16 %v521, %v520
    %v534 = vpack.c.b16 %v523, %v522
    %v535 = vpack.c.b16 %v525, %v524
    %v536 = vpack.c.b16 %v527, %v526
    %v537 = vpack.c.b16 %v529, %v528
    %546 = vmatprep.subr.bf16.mxu0 0
    %547 = vmatpush1.bf16.msra.mxu0 %v537
    %548 = vmatprep.subr.bf16.mxu0 0
    %549 = vmatpush1.bf16.msra.mxu0 %v536
    %550 = vmatprep.subr.bf16.mxu0 0
    %551 = vmatpush1.bf16.msra.mxu0 %v535
    %552 = vmatprep.subr.bf16.mxu0 0
    %553 = vmatpush1.bf16.msra.mxu0 %v534
    %554 = vmatprep.subr.bf16.mxu0 0
    %555 = vmatpush1.bf16.msra.mxu0 %v533
    %556 = vmatprep.subr.bf16.mxu0 0
    %557 = vmatpush1.bf16.msra.mxu0 %v532
    %558 = vmatprep.subr.bf16.mxu0 0
    %559 = vmatpush1.bf16.msra.mxu0 %v531
    %560 = vmatprep.subr.bf16.mxu0 0
    %561 = vmatpush1.bf16.msra.mxu0 %v530
    %562 = vmatprep.subr.bf16.mxu0 0
    %563 = vmatpush2.bf16.msra.mxu0 0
    %564 = vmatprep.subr.bf16.mxu0 0
    %565 = vmatpush2.bf16.msra.mxu0 0
    %566 = vmatprep.subr.bf16.mxu0 0
    %567 = vmatpush2.bf16.msra.mxu0 0
    %568 = vmatprep.subr.bf16.mxu0 0
    %569 = vmatpush2.bf16.msra.mxu0 0
    %570 = vmatprep.subr.bf16.mxu0 0
    %571 = vmatpush2.bf16.msra.mxu0 0
    %572 = vmatprep.subr.bf16.mxu0 0
    %573 = vmatpush2.bf16.msra.mxu0 0
    %574 = vmatprep.subr.bf16.mxu0 0
    %575 = vmatpush2.bf16.msra.mxu0 0
    %576 = vmatprep.subr.bf16.mxu0 0
    %577 = vmatpush2.bf16.msra.mxu0 0
    %578 = vmatprep.mubr.bf16.mxu0 0
    %579 = vmatmul.mubr.bf16.gmra.mxu0 %v474
    %v580 = vpop.f32.mrf.mxu0
    %v581 = vadd.f32 %v496, %v580
    %v582 = vpop.f32.mrf.mxu0
    %v583 = vpop.f32.mrf.mxu0
    %v584 = vpop.f32.mrf.mxu0
    %585 = vdwg.mxu0
    %v586 = vmax.f32 %v581, 0.0
    %vm587 = vcmask 64512
    %588 = vst.msk [vmem:[%s7] sm:$0xff] %vm587, %v586
    // Predicated region
    $region38: #{kalman_net_forward.1} parent=1 // pred_check
      _
    $region39: #{kalman_net_forward.1} parent=1 // pred_check_branch
      %590 = sbr.rel (0) target = $region41
    $region40: #{kalman_net_forward.1} parent=1 // pred_region
      _
    $region41: #{kalman_net_forward.1} parent=1 // pred_fallthru
      _
    // Predicated region
    $region42: #{kalman_net_forward.1} parent=1 // pred_check
      _
    $region43: #{kalman_net_forward.1} parent=1 // pred_check_branch
      %592 = sbr.rel (0) target = $region45
    $region44: #{kalman_net_forward.1} parent=1 // pred_region
      _
    $region45: #{kalman_net_forward.1} parent=1 // pred_fallthru
      _
    %593 = vsyncpa [#allocation3], 1
    %594 = vsyncpa [#allocation5], 1

</llo_original>
